<compile_context>
chip_gen: v7x
topology: tpu7x:2x2x1
jax: 0.10.0
libtpu: 0.0.40
codegen_flags: <defaults>
</compile_context>

<pallas_src>
import functools

import jax
import jax.numpy as jnp
from jax.experimental import pallas as pl
from jax.experimental.pallas import tpu as pltpu


def _folded_linear_kernel(x_ref, w_ref, b_ref, o_ref):
    # x_ref: (TILE_B, d_in)   w_ref: (d_in, d_out)   b_ref: (1, d_out)
    acc = jnp.dot(x_ref[...], w_ref[...], preferred_element_type=jnp.float32)
    o_ref[...] = (acc + b_ref[...]).astype(o_ref.dtype)


def fold_traj_encoder_params(params):
    """One-time prep: fold three stacked bias-linears into a single (W, b).

    Exact (up to f32 rounding) because the PyTorch stack has no activations.
    Call this once outside the forward pass (not per step).
    """
    w1, b1, w2, b2, w3, b3 = (p.astype(jnp.float32) for p in params)
    w = w1 @ w2 @ w3                       # (d_in, d_out)
    b = (b1 @ w2 + b2) @ w3 + b3           # (1, d_out)
    return w, b


@functools.partial(jax.jit, static_argnames=("tile_b",))
def traj_encoder_forward(x, folded_params, *, tile_b=1024):
    """x: (B, num_steps, 6) or anything flattening to (B, num_steps*6)."""
    w, b = folded_params
    batch = x.shape[0]
    d_in, d_out = w.shape

    # Same semantics as torch .view(B, num_steps*6); compute in f32.
    x2d = x.reshape(batch, d_in)
    if x2d.dtype != jnp.float32:
        x2d = x2d.astype(jnp.float32)

    # Batch tile:
    #  * batch <= tile_b  -> one grid step, block == full batch dim (always
    #    legal regardless of 8-alignment).
    #  * batch  > tile_b  -> fixed tile (multiple of 8 sublanes), ragged last
    #    tile handled by Pallas OOB masking (no batch padding in HBM).
    if batch <= tile_b:
        tb = batch
    else:
        tb = max((tile_b // 8) * 8, 8)
    grid = (pl.cdiv(batch, tb),)

    # Honest cost estimate for the folded single matmul.
    flops = 2 * batch * d_in * d_out
    bytes_accessed = 4 * (batch * (d_in + d_out) + d_in * d_out + d_out)

    # Explicit VMEM sizing: double-buffered x/out tiles + resident W/b,
    # plus compiler scratch headroom.  (Relevant for v7x's 64 MiB VMEM.)
    vmem_bytes = 4 * 2 * (tb * (d_in + d_out) + d_in * d_out + 2 * d_out)
    vmem_limit = max(vmem_bytes + (4 << 20), 8 << 20)

    out = pl.pallas_call(
        _folded_linear_kernel,
        out_shape=jax.ShapeDtypeStruct((batch, d_out), jnp.float32),
        grid=grid,
        in_specs=[
            pl.BlockSpec((tb, d_in), lambda i: (i, 0)),      # x: tiled over batch
            pl.BlockSpec((d_in, d_out), lambda i: (0, 0)),   # folded W (resident)
            pl.BlockSpec((1, d_out), lambda i: (0, 0)),      # folded b (resident)
        ],
        out_specs=pl.BlockSpec((tb, d_out), lambda i: (i, 0)),
        compiler_params=pltpu.CompilerParams(
            dimension_semantics=("parallel",),
            vmem_limit_bytes=vmem_limit,
        ),
        cost_estimate=pl.CostEstimate(
            flops=flops, transcendentals=0, bytes_accessed=bytes_accessed),
    )(x2d, w, b)

    return out


def init_traj_encoder_params(key, traj_feat_dim=128, num_steps=50,
                             dtype=jnp.float32):
    """Deterministic synthetic init matching nn.Linear shapes.

    PyTorch Linear stores weight as (out, in); we store the transpose (in, out)
    so the forward computes x @ W + b == x @ W_torch^T + b.
    """
    d_in = num_steps * 6
    dims = [(d_in, 128), (128, 128), (128, traj_feat_dim)]
    keys = jax.random.split(key, 2 * len(dims))
    params = []
    for i, (fan_in, fan_out) in enumerate(dims):
        bound = 1.0 / (fan_in ** 0.5)  # same bound as nn.Linear default init
        w = jax.random.uniform(keys[2 * i], (fan_in, fan_out), dtype, -bound, bound)
        b = jax.random.uniform(keys[2 * i + 1], (1, fan_out), dtype, -bound, bound)
        params += [w, b]
    return tuple(params)


def _reference_forward(x, params):
    """Unfolded 3-layer reference (mirrors the PyTorch module exactly)."""
    w1, b1, w2, b2, w3, b3 = params
    x2d = x.reshape(x.shape[0], w1.shape[0]).astype(jnp.float32)
    h = x2d @ w1 + b1
    h = h @ w2 + b2
    return h @ w3 + b3


if __name__ == "__main__":
    key = jax.random.PRNGKey(0)
    k_param, k_x = jax.random.split(key)

    num_steps = 50
    traj_feat_dim = 128
    batch = 2

    raw_params = init_traj_encoder_params(k_param, traj_feat_dim, num_steps)
    # One-time param prep (hoisted out of the jitted forward).
    folded = fold_traj_encoder_params(raw_params)
    folded = tuple(jax.block_until_ready(p) for p in folded)

    # Input trajectory: (batch, num_steps, 6), flattened inside forward.
    x = jax.random.normal(k_x, (batch, num_steps, 6), dtype=jnp.float32)

    out = jax.block_until_ready(traj_encoder_forward(x, folded))
    ref = _reference_forward(x, raw_params)
    assert out.shape == (batch, traj_feat_dim), out.shape
    assert out.dtype == jnp.float32, out.dtype
    assert jnp.allclose(out, ref, atol=2e-4, rtol=2e-4), float(jnp.abs(out - ref).max())

    # Larger batch: single big tile (grid=1, block == full batch dim).
    big_batch = 600
    xb = jax.random.normal(jax.random.PRNGKey(1), (big_batch, num_steps, 6),
                           dtype=jnp.float32)
    outb = jax.block_until_ready(traj_encoder_forward(xb, folded))
    refb = _reference_forward(xb, raw_params)
    assert outb.shape == (big_batch, traj_feat_dim)
    assert jnp.allclose(outb, refb, atol=2e-4, rtol=2e-4), float(jnp.abs(outb - refb).max())

    # Multi-tile + ragged last tile path (grid=3 with tile_b=256, 600 = 256+256+88).
    outc = jax.block_until_ready(traj_encoder_forward(xb, folded, tile_b=256))
    assert jnp.allclose(outc, refb, atol=2e-4, rtol=2e-4), float(jnp.abs(outc - refb).max())

    print("KERNEL_OK")
</pallas_src>

<mosaic_0001>
module attributes {stable_mosaic.version = 11 : i64} {
  func.func @_folded_linear_kernel(%arg0: i32, %arg1: memref<2x300xf32, #tpu.memory_space<vmem>>, %arg2: memref<300x128xf32, #tpu.memory_space<vmem>>, %arg3: memref<1x128xf32, #tpu.memory_space<vmem>>, %arg4: memref<2x128xf32, #tpu.memory_space<vmem>>) attributes {dimension_semantics = [#tpu.dimension_semantics<parallel>], iteration_bounds = array<i64: 1>, scalar_prefetch = 0 : i64, scratch_operands = 0 : i64, tpu.core_type = #tpu.core_type<tc>, window_params = [{transform_indices = @transform_0, window_bounds = array<i64: 2, 300>}, {pipeline_mode = #tpu.pipeline_mode<synchronous>, transform_indices = @transform_1, window_bounds = array<i64: 300, 128>}, {pipeline_mode = #tpu.pipeline_mode<synchronous>, transform_indices = @transform_2, window_bounds = array<i64: 1, 128>}, {transform_indices = @transform_3, window_bounds = array<i64: 2, 128>}]} {
    %c0 = arith.constant 0 : index
    %c0_0 = arith.constant 0 : index
    %0 = vector.load %arg1[%c0, %c0_0] : memref<2x300xf32, #tpu.memory_space<vmem>>, vector<2x300xf32>
    %c0_1 = arith.constant 0 : index
    %c0_2 = arith.constant 0 : index
    %1 = vector.load %arg2[%c0_1, %c0_2] : memref<300x128xf32, #tpu.memory_space<vmem>>, vector<300x128xf32>
    %cst = arith.constant dense<0.000000e+00> : vector<2x128xf32>
    %2 = tpu.matmul %0, %1, %cst {dimension_numbers = #tpu.dot_dimension_numbers<[1], [0], [0], [1], [0, 0, 1, 1], [], []>} : vector<2x300xf32>, vector<300x128xf32>, vector<2x128xf32> -> vector<2x128xf32>
    %c0_3 = arith.constant 0 : index
    %c0_4 = arith.constant 0 : index
    %3 = vector.load %arg3[%c0_3, %c0_4] : memref<1x128xf32, #tpu.memory_space<vmem>>, vector<1x128xf32>
    %4 = vector.broadcast %3 : vector<1x128xf32> to vector<2x128xf32>
    %5 = arith.addf %2, %4 : vector<2x128xf32>
    %c0_5 = arith.constant 0 : index
    %c0_6 = arith.constant 0 : index
    %6 = vector.load %arg4[%c0_5, %c0_6] : memref<2x128xf32, #tpu.memory_space<vmem>>, vector<2x128xf32>
    tpu.vector_store %arg4[%c0_5, %c0_6], %5 {strides = array<i32>} : memref<2x128xf32, #tpu.memory_space<vmem>>, vector<2x128xf32>,
    return
  }
  func.func @transform_0(%arg0: i32) -> (i32, i32) {
    %c0_i32 = arith.constant 0 : i32
    %c0_i32_0 = arith.constant 0 : i32
    return %arg0, %c0_i32 : i32, i32
  }
  func.func @transform_1(%arg0: i32) -> (i32, i32) {
    %c0_i32 = arith.constant 0 : i32
    %c0_i32_0 = arith.constant 0 : i32
    %c0_i32_1 = arith.constant 0 : i32
    return %c0_i32, %c0_i32_0 : i32, i32
  }
  func.func @transform_2(%arg0: i32) -> (i32, i32) {
    %c0_i32 = arith.constant 0 : i32
    %c0_i32_0 = arith.constant 0 : i32
    %c0_i32_1 = arith.constant 0 : i32
    return %c0_i32, %c0_i32_0 : i32, i32
  }
  func.func @transform_3(%arg0: i32) -> (i32, i32) {
    %c0_i32 = arith.constant 0 : i32
    %c0_i32_0 = arith.constant 0 : i32
    return %arg0, %c0_i32 : i32, i32
  }
}

</mosaic_0001>

<llo_original>
// kernel: traj_encoder_forward.1
$region0: #{traj_encoder_forward.1}
  #allocation0 [shape = 'u32[]', space=smem, size = 0x4, offset = 0x4, fixed_abs, tag = 'smem constant byte address 0x4 - core index']
  #allocation1 [shape = 'u32[144,128]{1,0:T(1,128)}', space=vmem, size = 0x12000, scoped, tag = 'internal scratch']
  %s0 = inlined_call_operand.vmem [shape: f32[2,300], index: 0, kind: input, shape index: {}]
  %s1 = inlined_call_operand.hbm [shape: f32[300,128], index: 1, kind: input, shape index: {}]
  %s2 = inlined_call_operand.vmem [shape: f32[1,128], index: 2, kind: input, shape index: {}]
  %s3 = inlined_call_operand.hbm [shape: f32[2,128], index: 3, kind: output, shape index: {}]
  %s4 = sld [smem:[#allocation0]]
  $region26: #{traj_encoder_forward.1} parent=0
    _
  %s6 = ssub.s32 1, %s4
  %s7 = scalar_select 0, %s6, %s4
  $region1: #{traj_encoder_forward.1} parent=0
    #allocation2 [shape = 'u8[155648]{0}', space=vmem, size = 0x26000, scoped, tag = 'input window, operand 1, single buffered']
    #allocation3 [shape = 's32[1]{0}', space=sflag, size = 0x4, scoped, tag = 'scoped memory for traj_encoder_forward.1']
    #allocation4 [shape = 's32[1]{0}', space=sflag, size = 0x4, scoped, tag = 'scoped memory for traj_encoder_forward.1']
    #allocation5 [shape = 'u8[1024]{0}', space=vmem, size = 0x400, scoped, tag = 'output window, operand 0, single buffered']
    %8 = vsyncpa [#allocation3], 0
    %9 = vsyncpa [#allocation4], 0
    // Predicated region
    $region2: #{traj_encoder_forward.1} parent=1 // pred_check
      _
    $region3: #{traj_encoder_forward.1} parent=1 // pred_check_branch
      %11 = sbr.rel (0) target = $region5
    $region4: #{traj_encoder_forward.1} parent=1 // pred_region
      _
    $region5: #{traj_encoder_forward.1} parent=1 // pred_fallthru
      _
    // Predicated region
    $region6: #{traj_encoder_forward.1} parent=1 // pred_check
      _
    $region7: #{traj_encoder_forward.1} parent=1 // pred_check_branch
      %13 = sbr.rel (0) target = $region9
    $region8: #{traj_encoder_forward.1} parent=1 // pred_region
      %s15 = ssub.s32 4864, 4864
      %16 = vsyncadd [#allocation3], %s15
      %s17 = sshll.u32 [#allocation2], 4
      %s18 = int_to_ptr.vmem [resolvable:$true] %s17
      %23 = dma.hbm_to_vmem [thread:$0]  %s1, 4864, %s18, [#allocation3], 128, 128, 8
    $region9: #{traj_encoder_forward.1} parent=1 // pred_fallthru
      _
    // Predicated region
    $region10: #{traj_encoder_forward.1} parent=1 // pred_check
      _
    $region11: #{traj_encoder_forward.1} parent=1 // pred_check_branch
      %25 = sbr.rel (0) target = $region13
    $region12: #{traj_encoder_forward.1} parent=1 // pred_region
      _
    $region13: #{traj_encoder_forward.1} parent=1 // pred_fallthru
      _
    // Predicated region
    $region14: #{traj_encoder_forward.1} parent=1 // pred_check
      _
    $region15: #{traj_encoder_forward.1} parent=1 // pred_check_branch
      %27 = sbr.rel (0) target = $region17
    $region16: #{traj_encoder_forward.1} parent=1 // pred_region
      %28 = dma.done [#allocation3], 4864
    $region17: #{traj_encoder_forward.1} parent=1 // pred_fallthru
      _
    %v29 = vld [vmem:[%s0] sm:$0x3f]
    %v30 = vld [vmem:[#allocation2] sm:$0xff]
    %v31 = vld [vmem:[#allocation2 + $0x8] sm:$0xff]
    %v32 = vld [vmem:[#allocation2 + $0x10] sm:$0xff]
    %v33 = vld [vmem:[#allocation2 + $0x18] sm:$0xff]
    %v34 = vld [vmem:[#allocation2 + $0x20] sm:$0xff]
    %v35 = vld [vmem:[#allocation2 + $0x28] sm:$0xff]
    %v36 = vld [vmem:[#allocation2 + $0x30] sm:$0xff]
    %v37 = vld [vmem:[#allocation2 + $0x38] sm:$0xff]
    %v38 = vld [vmem:[#allocation2 + $0x40] sm:$0xff]
    %v39 = vld [vmem:[#allocation2 + $0x48] sm:$0xff]
    %v40 = vld [vmem:[#allocation2 + $0x50] sm:$0xff]
    %v41 = vld [vmem:[#allocation2 + $0x58] sm:$0xff]
    %v42 = vld [vmem:[#allocation2 + $0x60] sm:$0xff]
    %v43 = vld [vmem:[#allocation2 + $0x68] sm:$0xff]
    %v44 = vld [vmem:[#allocation2 + $0x70] sm:$0xff]
    %v45 = vld [vmem:[#allocation2 + $0x78] sm:$0xff]
    %v46 = vld [vmem:[#allocation2 + $0x80] sm:$0xff]
    %v47 = vld [vmem:[#allocation2 + $0x88] sm:$0xff]
    %v48 = vld [vmem:[#allocation2 + $0x90] sm:$0xff]
    %v49 = vld [vmem:[#allocation2 + $0x98] sm:$0xff]
    %v50 = vld [vmem:[#allocation2 + $0xa0] sm:$0xff]
    %v51 = vld [vmem:[#allocation2 + $0xa8] sm:$0xff]
    %v52 = vld [vmem:[#allocation2 + $0xb0] sm:$0xff]
    %v53 = vld [vmem:[#allocation2 + $0xb8] sm:$0xff]
    %v54 = vld [vmem:[#allocation2 + $0xc0] sm:$0xff]
    %v55 = vld [vmem:[#allocation2 + $0xc8] sm:$0xff]
    %v56 = vld [vmem:[#allocation2 + $0xd0] sm:$0xff]
    %v57 = vld [vmem:[#allocation2 + $0xd8] sm:$0xff]
    %v58 = vld [vmem:[#allocation2 + $0xe0] sm:$0xff]
    %v59 = vld [vmem:[#allocation2 + $0xe8] sm:$0xff]
    %v60 = vld [vmem:[#allocation2 + $0xf0] sm:$0xff]
    %v61 = vld [vmem:[#allocation2 + $0xf8] sm:$0xff]
    %v62 = vld [vmem:[#allocation2 + $0x100] sm:$0xff]
    %v63 = vld [vmem:[#allocation2 + $0x108] sm:$0xff]
    %v64 = vld [vmem:[#allocation2 + $0x110] sm:$0xff]
    %v65 = vld [vmem:[#allocation2 + $0x118] sm:$0xff]
    %v66 = vld [vmem:[#allocation2 + $0x120] sm:$0xff]
    %v67 = vld [vmem:[#allocation2 + $0x128] sm:$0xf]
    %v68 = vld [vmem:[%s2] sm:$0x1]
    %v70 = vlaneseq
    %v71 = vshrl.u32 %v70, 7
    %v72 = vsub.s32 0, %v71
    %v73 = vrot.slane %v68, %v72
    %v76 = vcombine.high %v29, %v29
    %v78 = vunpack.c.l.s4 1983009808
    %v79 = vunpack.c.0.s8 %v78
    %v80 = vlaneseq
    %v81 = vshrl.u32 %v80, 7
    %v82 = vsub.s32 %v79, %v81
    %v83 = vrot.slane %v29, %v82
    %v85 = vunpack.c.l.s4 1983009808
    %v86 = vunpack.c.0.s8 %v85
    %v87 = vlaneseq
    %v88 = vshrl.u32 %v87, 7
    %v89 = vsub.s32 %v86, %v88
    %v90 = vrot.slane %v76, %v89
    %v91 = vcombine.high %v83, %v83
    %vm94 = vcmask 359424
    %v95 = vsel %vm94, %v90, 0
    %vm97 = vcmask 1043456
    %v99 = vsel %vm97, %v67, 0
    %101 = vmatprep.subr.mxu0 0.0
    %102 = vmatpush1.msra.mxu0 %v30
    %103 = vmatprep.subr.mxu0 0.0
    %104 = vmatpush1.msra.mxu0 %v31
    %105 = vmatprep.subr.mxu0 0.0
    %106 = vmatpush1.msra.mxu0 %v32
    %107 = vmatprep.subr.mxu0 0.0
    %108 = vmatpush1.msra.mxu0 %v33
    %109 = vmatprep.subr.mxu0 0.0
    %110 = vmatpush1.msra.mxu0 %v34
    %111 = vmatprep.subr.mxu0 0.0
    %112 = vmatpush1.msra.mxu0 %v35
    %113 = vmatprep.subr.mxu0 0.0
    %114 = vmatpush1.msra.mxu0 %v36
    %115 = vmatprep.subr.mxu0 0.0
    %116 = vmatpush1.msra.mxu0 %v37
    %117 = vmatprep.subr.mxu0 0.0
    %118 = vmatpush1.msra.mxu0 %v38
    %119 = vmatprep.subr.mxu0 0.0
    %120 = vmatpush1.msra.mxu0 %v39
    %121 = vmatprep.subr.mxu0 0.0
    %122 = vmatpush1.msra.mxu0 %v40
    %123 = vmatprep.subr.mxu0 0.0
    %124 = vmatpush1.msra.mxu0 %v41
    %125 = vmatprep.subr.mxu0 0.0
    %126 = vmatpush1.msra.mxu0 %v42
    %127 = vmatprep.subr.mxu0 0.0
    %128 = vmatpush1.msra.mxu0 %v43
    %129 = vmatprep.subr.mxu0 0.0
    %130 = vmatpush1.msra.mxu0 %v44
    %131 = vmatprep.subr.mxu0 0.0
    %132 = vmatpush1.msra.mxu0 %v45
    %133 = vmatprep.subr.mxu0 0.0
    %134 = vmatpush1.msra.mxu0 %v46
    %135 = vmatprep.subr.mxu0 0.0
    %136 = vmatpush1.msra.mxu0 %v47
    %137 = vmatprep.subr.mxu0 0.0
    %138 = vmatpush1.msra.mxu0 %v48
    %139 = vmatprep.subr.mxu0 0.0
    %140 = vmatpush1.msra.mxu0 %v49
    %141 = vmatprep.subr.mxu0 0.0
    %142 = vmatpush1.msra.mxu0 %v50
    %143 = vmatprep.subr.mxu0 0.0
    %144 = vmatpush1.msra.mxu0 %v51
    %145 = vmatprep.subr.mxu0 0.0
    %146 = vmatpush1.msra.mxu0 %v52
    %147 = vmatprep.subr.mxu0 0.0
    %148 = vmatpush1.msra.mxu0 %v53
    %149 = vmatprep.subr.mxu0 0.0
    %150 = vmatpush1.msra.mxu0 %v54
    %151 = vmatprep.subr.mxu0 0.0
    %152 = vmatpush1.msra.mxu0 %v55
    %153 = vmatprep.subr.mxu0 0.0
    %154 = vmatpush1.msra.mxu0 %v56
    %155 = vmatprep.subr.mxu0 0.0
    %156 = vmatpush1.msra.mxu0 %v57
    %157 = vmatprep.subr.mxu0 0.0
    %158 = vmatpush1.msra.mxu0 %v58
    %159 = vmatprep.subr.mxu0 0.0
    %160 = vmatpush1.msra.mxu0 %v59
    %161 = vmatprep.subr.mxu0 0.0
    %162 = vmatpush1.msra.mxu0 %v60
    %163 = vmatprep.subr.mxu0 0.0
    %164 = vmatpush1.msra.mxu0 %v61
    %165 = vmatprep.mubr.f32.mxu0 %v91
    %166 = vmatmul.mubr.f32.gmra.mrb[0].mxu0 %v83
    %v167 = vpop.f32.mrb[0].mxu0
    %v168 = vadd.f32 %v73, %v167
    %v169 = vpop.f32.mrb[0].mxu0
    %170 = vdwg.mxu0
    %171 = vmatprep.subr.mxu0 0.0
    %172 = vmatpush1.msra.mxu0 %v62
    %173 = vmatprep.subr.mxu0 0.0
    %174 = vmatpush1.msra.mxu0 %v63
    %175 = vmatprep.subr.mxu0 0.0
    %176 = vmatpush1.msra.mxu0 %v64
    %177 = vmatprep.subr.mxu0 0.0
    %178 = vmatpush1.msra.mxu0 %v65
    %179 = vmatprep.subr.mxu0 0.0
    %180 = vmatpush1.msra.mxu0 %v66
    %181 = vmatprep.subr.mxu0 0.0
    %182 = vmatpush1.msra.mxu0 %v99
    %183 = vmatprep.subr.mxu0 0.0
    %184 = vmatpush1.msra.mxu0 0.0
    %185 = vmatprep.subr.mxu0 0.0
    %186 = vmatpush1.msra.mxu0 0.0
    %187 = vmatprep.subr.mxu0 0.0
    %188 = vmatpush1.msra.mxu0 0.0
    %189 = vmatprep.subr.mxu0 0.0
    %190 = vmatpush1.msra.mxu0 0.0
    %191 = vmatprep.subr.mxu0 0.0
    %192 = vmatpush1.msra.mxu0 0.0
    %193 = vmatprep.subr.mxu0 0.0
    %194 = vmatpush1.msra.mxu0 0.0
    %195 = vmatprep.subr.mxu0 0.0
    %196 = vmatpush1.msra.mxu0 0.0
    %197 = vmatprep.subr.mxu0 0.0
    %198 = vmatpush1.msra.mxu0 0.0
    %199 = vmatprep.subr.mxu0 0.0
    %200 = vmatpush1.msra.mxu0 0.0
    %201 = vmatprep.subr.mxu0 0.0
    %202 = vmatpush1.msra.mxu0 0.0
    %203 = vmatprep.subr.mxu0 0.0
    %204 = vmatpush1.msra.mxu0 0.0
    %205 = vmatprep.subr.mxu0 0.0
    %206 = vmatpush1.msra.mxu0 0.0
    %207 = vmatprep.subr.mxu0 0.0
    %208 = vmatpush1.msra.mxu0 0.0
    %209 = vmatprep.subr.mxu0 0.0
    %210 = vmatpush1.msra.mxu0 0.0
    %211 = vmatprep.subr.mxu0 0.0
    %212 = vmatpush1.msra.mxu0 0.0
    %213 = vmatprep.subr.mxu0 0.0
    %214 = vmatpush1.msra.mxu0 0.0
    %215 = vmatprep.subr.mxu0 0.0
    %216 = vmatpush1.msra.mxu0 0.0
    %217 = vmatprep.subr.mxu0 0.0
    %218 = vmatpush1.msra.mxu0 0.0
    %219 = vmatprep.subr.mxu0 0.0
    %220 = vmatpush1.msra.mxu0 0.0
    %221 = vmatprep.subr.mxu0 0.0
    %222 = vmatpush1.msra.mxu0 0.0
    %223 = vmatprep.subr.mxu0 0.0
    %224 = vmatpush1.msra.mxu0 0.0
    %225 = vmatprep.subr.mxu0 0.0
    %226 = vmatpush1.msra.mxu0 0.0
    %227 = vmatprep.subr.mxu0 0.0
    %228 = vmatpush1.msra.mxu0 0.0
    %229 = vmatprep.subr.mxu0 0.0
    %230 = vmatpush1.msra.mxu0 0.0
    %231 = vmatprep.subr.mxu0 0.0
    %232 = vmatpush1.msra.mxu0 0.0
    %233 = vmatprep.subr.mxu0 0.0
    %234 = vmatpush1.msra.mxu0 0.0
    %235 = vmatprep.mubr.f32.mxu0 0.0
    %236 = vmatmul.mubr.f32.gmra.mrb[0].mxu0 %v95
    %v237 = vpop.f32.mrb[0].mxu0
    %v238 = vadd.f32 %v168, %v237
    %v239 = vpop.f32.mrb[0].mxu0
    %240 = vdwg.mxu0
    %241 = vst [vmem:[#allocation5] sm:$0x3] %v238
    // Predicated region
    $region18: #{traj_encoder_forward.1} parent=1 // pred_check
      _
    $region19: #{traj_encoder_forward.1} parent=1 // pred_check_branch
      %243 = sbr.rel (0) target = $region21
    $region20: #{traj_encoder_forward.1} parent=1 // pred_region
      %s245 = ssub.s32 32, 32
      %246 = vsyncadd [#allocation4], %s245
      %s248 = sshll.u32 [#allocation5], 4
      %s249 = int_to_ptr.vmem [resolvable:$true] %s248
      %251 = dma.vmem_to_hbm [thread:$0]  %s249, 32, %s3, [#allocation4]
    $region21: #{traj_encoder_forward.1} parent=1 // pred_fallthru
      _
    // Predicated region
    $region22: #{traj_encoder_forward.1} parent=1 // pred_check
      _
    $region23: #{traj_encoder_forward.1} parent=1 // pred_check_branch
      %253 = sbr.rel (0) target = $region25
    $region24: #{traj_encoder_forward.1} parent=1 // pred_region
      %254 = dma.done [#allocation4], 32
    $region25: #{traj_encoder_forward.1} parent=1 // pred_fallthru
      _
    %255 = vsyncpa [#allocation3], 1
    %256 = vsyncpa [#allocation4], 1

</llo_original>
